<compile_context>
chip_gen: v7x
topology: tpu7x:2x2x1
jax: 0.10.0
libtpu: 0.0.40
codegen_flags: <defaults>
</compile_context>

<pallas_src>
import functools

import jax
import jax.numpy as jnp
from jax.experimental import pallas as pl
from jax.experimental.pallas import tpu as pltpu

LEADER_STATE_SIZE = 5
PED_STATE_SIZE = 5
OUTPUT_SIZE = 2

# Optional v6e/v7x tweak: bf16 operands for the layer-2 MXU matmul (accumulate
# in f32).  Default False to keep the 1e-4 numerical validation meaningful.
MXU_BF16 = False


def _set_embedding_kernel(ped_ref, w1_ref, b1_ref, w2_ref, b2_ref, w3_ref,
                          b3_ref, out_ref, *, P, use_bf16_mxu):
    ped = ped_ref[...]                               # (5, P, TB)
    catch = ped[3]                                   # (P, TB)
    x_c = ped[0] * catch                             # (P, TB)
    y_c = ped[1] * catch                             # (P, TB)

    w1x = w1_ref[:, 0:1]                             # (Hp, 1)
    w1y = w1_ref[:, 1:2]                             # (Hp, 1)
    b1 = b1_ref[...]                                 # (Hp, 1)
    w2 = w2_ref[...]                                 # (Hp, Hp)
    b2 = b2_ref[...]                                 # (Hp, 1)

    mxu_dtype = jnp.bfloat16 if use_bf16_mxu else jnp.float32
    w2m = w2.astype(mxu_dtype)

    # Short static loop over pedestrians (P is small).  Per pedestrian:
    #   layer 1 = two rank-1 VPU broadcasts + tanh (no degenerate K=2 matmul);
    #   layer 2 = lane-dense (Hp,Hp)@(Hp,TB) MXU matmul + tanh.
    # The per-batch pool is the running sum (VPU adds), done BEFORE layer 3.
    h_sum = jnp.zeros((b1.shape[0], x_c.shape[-1]), jnp.float32)
    for p in range(P):
        h1 = jnp.tanh(w1x * x_c[p:p + 1] + w1y * y_c[p:p + 1] + b1)        # (Hp, TB)
        h2 = jnp.tanh(jnp.dot(w2m, h1.astype(mxu_dtype),
                              preferred_element_type=jnp.float32) + b2)    # (Hp, TB)
        h_sum = h_sum + h2

    # Affine layer 3 on the pooled state; lane-dense (2, TB) output store.
    out_ref[...] = (jnp.dot(w3_ref[...], h_sum, preferred_element_type=jnp.float32)
                    + float(P) * b3_ref[...])


def _choose_tiling(B, P, target_rows=8192):
    """Pick (B_pad, TB): TB batch columns processed per grid step.

    With a multi-step grid the blocks' last dim is TB, so TB must be a
    multiple of 128 (lane tiling); awkward B is zero-padded up to a multiple
    of TB and the extra columns are sliced off in the wrapper.  Small batches
    take a single full-extent tile.  Large batches get >= 2 steps on the
    "parallel" axis so both v7x TensorCores receive work.
    """
    tb_max = max(128, (target_rows // max(P, 1)) // 128 * 128)
    if B < 256 and B <= tb_max:
        return B, B                       # single tile, no padding
    tb = min(tb_max, max(128, (B // 2) // 128 * 128))
    b_pad = pl.cdiv(B, tb) * tb
    return b_pad, tb


def init_params(key, input_size):
    """Deterministic init matching the nn.Linear shapes of NNSetEmbedding."""
    hidden = input_size // 5 * 2
    ks = jax.random.split(key, 6)

    def linear(kw, kb, fan_in, fan_out):
        bound = 1.0 / jnp.sqrt(jnp.float32(fan_in))
        w = jax.random.uniform(kw, (fan_in, fan_out), jnp.float32, -bound, bound)
        b = jax.random.uniform(kb, (1, fan_out), jnp.float32, -bound, bound)
        return w, b

    w1, b1 = linear(ks[0], ks[1], 2, hidden)
    w2, b2 = linear(ks[2], ks[3], hidden, hidden)
    w3, b3 = linear(ks[4], ks[5], hidden, OUTPUT_SIZE)
    return (w1, b1, w2, b2, w3, b3)


@jax.jit
def nn_set_embedding(inputs, params):
    """Pallas implementation of NNSetEmbedding.forward."""
    batch_flag = inputs.ndim == 1
    if batch_flag:
        inputs = inputs[None, :]
    inputs = inputs.astype(jnp.float32)

    B = inputs.shape[0]
    leader = inputs[:, :LEADER_STATE_SIZE]                                  # (B, 5)
    P = (inputs.shape[1] - LEADER_STATE_SIZE) // PED_STATE_SIZE
    peds = inputs[:, LEADER_STATE_SIZE:].reshape(B, P, PED_STATE_SIZE)      # (B, P, 5)
    ped3 = jnp.transpose(peds, (2, 1, 0))                                   # (5, P, B)

    w1, b1, w2, b2, w3, b3 = (jnp.asarray(p, jnp.float32) for p in params)
    H = w1.shape[1]
    Hp = -(-H // 8) * 8                      # pad hidden to a multiple of 8
    pad = Hp - H
    # Transposed, hidden-padded weights (padding is exact: padded channels are
    # zero through both tanh layers and contribute nothing to layer 3).
    w1t = jnp.pad(w1.T, ((0, pad), (0, 0)))                                 # (Hp, 2)
    b1t = jnp.pad(b1.T, ((0, pad), (0, 0)))                                 # (Hp, 1)
    w2t = jnp.pad(w2.T, ((0, pad), (0, pad)))                               # (Hp, Hp)
    b2t = jnp.pad(b2.T, ((0, pad), (0, 0)))                                 # (Hp, 1)
    w3t = jnp.pad(w3.T, ((0, 0), (0, pad)))                                 # (2, Hp)
    b3t = b3.T                                                              # (2, 1)

    B_pad, TB = _choose_tiling(B, P)
    if B_pad != B:
        ped3 = jnp.pad(ped3, ((0, 0), (0, 0), (0, B_pad - B)))
    grid = (B_pad // TB,)
    N = B_pad * P

    cost = pl.CostEstimate(
        flops=int(2 * N * Hp * Hp + 7 * N * Hp + 4 * B_pad * Hp),
        transcendentals=int(2 * N * Hp),
        bytes_accessed=int(4 * (PED_STATE_SIZE * N + OUTPUT_SIZE * B_pad
                                + 3 * Hp + Hp * Hp + 2 * Hp
                                + OUTPUT_SIZE * Hp + OUTPUT_SIZE)),
    )

    ped_sum_t = pl.pallas_call(
        functools.partial(_set_embedding_kernel, P=P, use_bf16_mxu=MXU_BF16),
        out_shape=jax.ShapeDtypeStruct((OUTPUT_SIZE, B_pad), jnp.float32),
        grid_spec=pltpu.PrefetchScalarGridSpec(
            num_scalar_prefetch=0,
            grid=grid,
            in_specs=[
                pl.BlockSpec((PED_STATE_SIZE, P, TB), lambda i: (0, 0, i)),  # ped slab
                pl.BlockSpec((Hp, 2), lambda i: (0, 0)),                     # w1^T (resident)
                pl.BlockSpec((Hp, 1), lambda i: (0, 0)),                     # b1^T
                pl.BlockSpec((Hp, Hp), lambda i: (0, 0)),                    # w2^T
                pl.BlockSpec((Hp, 1), lambda i: (0, 0)),                     # b2^T
                pl.BlockSpec((OUTPUT_SIZE, Hp), lambda i: (0, 0)),           # w3^T
                pl.BlockSpec((OUTPUT_SIZE, 1), lambda i: (0, 0)),            # b3^T
            ],
            out_specs=pl.BlockSpec((OUTPUT_SIZE, TB), lambda i: (0, i)),     # lane-dense
        ),
        compiler_params=pltpu.CompilerParams(
            dimension_semantics=("parallel",)),
        cost_estimate=cost,
    )(ped3, w1t, b1t, w2t, b2t, w3t, b3t)

    ped_sum = ped_sum_t[:, :B].T                                            # (B, 2)
    # merged_output = cat([leader, summed embedding], dim=1) — done by XLA in
    # the wrapper (tiny), not inside the kernel.
    out = jnp.concatenate([leader, ped_sum], axis=1)                         # (B, 7)
    if batch_flag:
        out = jnp.squeeze(out)
    return out


def reference(inputs, params):
    """Pure-JAX replica of the PyTorch forward for validation."""
    if inputs.ndim == 1:
        inputs = inputs[None, :]
    inputs = inputs.astype(jnp.float32)
    B = inputs.shape[0]
    leader = inputs[:, :LEADER_STATE_SIZE]
    peds = inputs[:, LEADER_STATE_SIZE:].reshape(B, -1, PED_STATE_SIZE)
    x_c = peds[:, :, 0] * peds[:, :, 3]
    y_c = peds[:, :, 1] * peds[:, :, 3]
    s = jnp.stack([x_c, y_c], axis=-1)                                       # (B, P, 2)
    w1, b1, w2, b2, w3, b3 = params
    hi = jax.lax.Precision.HIGHEST
    h = jnp.tanh(jnp.einsum('bpi,ij->bpj', s, w1, precision=hi) + b1)
    h = jnp.tanh(jnp.einsum('bpi,ij->bpj', h, w2, precision=hi) + b2)
    o = jnp.einsum('bpi,ij->bpj', h, w3, precision=hi) + b3
    return jnp.concatenate([leader, o.sum(axis=1)], axis=1)


if __name__ == "__main__":
    INPUT_SIZE = 45                # 5 leader + 8 pedestrians * 5, hidden = 18
    BATCH = 4

    key = jax.random.PRNGKey(0)
    k_in, k_params, k_big, k_pad, k_1d = jax.random.split(key, 5)
    params = init_params(k_params, INPUT_SIZE)

    # Small batched case (single-tile path).
    inputs = jax.random.normal(k_in, (BATCH, INPUT_SIZE), dtype=jnp.float32)
    out = jax.block_until_ready(nn_set_embedding(inputs, params))
    ref = reference(inputs, params)
    assert out.shape == (BATCH, LEADER_STATE_SIZE + OUTPUT_SIZE)
    assert jnp.allclose(out, ref, atol=1e-4, rtol=1e-4)

    # Larger batch exercising the multi-block (tiled, pipelined, 2-core) path.
    inputs_big = jax.random.normal(k_big, (256, INPUT_SIZE), dtype=jnp.float32)
    out_big = jax.block_until_ready(nn_set_embedding(inputs_big, params))
    ref_big = reference(inputs_big, params)
    assert out_big.shape == (256, LEADER_STATE_SIZE + OUTPUT_SIZE)
    assert jnp.allclose(out_big, ref_big, atol=1e-4, rtol=1e-4)

    # Awkward batch size exercising the pad-to-tile path (B=300 -> B_pad=384).
    inputs_pad = jax.random.normal(k_pad, (300, INPUT_SIZE), dtype=jnp.float32)
    out_pad = jax.block_until_ready(nn_set_embedding(inputs_pad, params))
    ref_pad = reference(inputs_pad, params)
    assert out_pad.shape == (300, LEADER_STATE_SIZE + OUTPUT_SIZE)
    assert jnp.allclose(out_pad, ref_pad, atol=1e-4, rtol=1e-4)

    # Unbatched (1-D) input path, as in the PyTorch module.
    inputs_1d = jax.random.normal(k_1d, (INPUT_SIZE,), dtype=jnp.float32)
    out_1d = jax.block_until_ready(nn_set_embedding(inputs_1d, params))
    ref_1d = reference(inputs_1d, params)[0]
    assert out_1d.shape == (LEADER_STATE_SIZE + OUTPUT_SIZE,)
    assert jnp.allclose(out_1d, ref_1d, atol=1e-4, rtol=1e-4)

    print("KERNEL_OK")
</pallas_src>

<mosaic_0001>
module attributes {stable_mosaic.version = 11 : i64} {
  func.func @_set_embedding_kernel(%arg0: i32, %arg1: memref<5x8x4xf32, #tpu.memory_space<vmem>>, %arg2: memref<24x2xf32, #tpu.memory_space<vmem>>, %arg3: memref<24x1xf32, #tpu.memory_space<vmem>>, %arg4: memref<24x24xf32, #tpu.memory_space<vmem>>, %arg5: memref<24x1xf32, #tpu.memory_space<vmem>>, %arg6: memref<2x24xf32, #tpu.memory_space<vmem>>, %arg7: memref<2x1xf32, #tpu.memory_space<vmem>>, %arg8: memref<2x4xf32, #tpu.memory_space<vmem>>) attributes {dimension_semantics = [#tpu.dimension_semantics<parallel>], iteration_bounds = array<i64: 1>, scalar_prefetch = 0 : i64, scratch_operands = 0 : i64, tpu.core_type = #tpu.core_type<tc>, window_params = [{transform_indices = @transform_0, window_bounds = array<i64: 5, 8, 4>}, {pipeline_mode = #tpu.pipeline_mode<synchronous>, transform_indices = @transform_1, window_bounds = array<i64: 24, 2>}, {pipeline_mode = #tpu.pipeline_mode<synchronous>, transform_indices = @transform_2, window_bounds = array<i64: 24, 1>}, {pipeline_mode = #tpu.pipeline_mode<synchronous>, transform_indices = @transform_3, window_bounds = array<i64: 24, 24>}, {pipeline_mode = #tpu.pipeline_mode<synchronous>, transform_indices = @transform_4, window_bounds = array<i64: 24, 1>}, {pipeline_mode = #tpu.pipeline_mode<synchronous>, transform_indices = @transform_5, window_bounds = array<i64: 2, 24>}, {pipeline_mode = #tpu.pipeline_mode<synchronous>, transform_indices = @transform_6, window_bounds = array<i64: 2, 1>}, {transform_indices = @transform_7, window_bounds = array<i64: 2, 4>}]} {
    %c0 = arith.constant 0 : index
    %c0_0 = arith.constant 0 : index
    %c0_1 = arith.constant 0 : index
    %0 = vector.load %arg1[%c0, %c0_0, %c0_1] : memref<5x8x4xf32, #tpu.memory_space<vmem>>, vector<5x8x4xf32>
    %1 = vector.extract_strided_slice %0 {offsets = [3, 0, 0], sizes = [1, 8, 4], strides = [1, 1, 1]} : vector<5x8x4xf32> to vector<1x8x4xf32>
    %2 = vector.shape_cast %1 : vector<1x8x4xf32> to vector<8x4xf32>
    %3 = vector.extract_strided_slice %0 {offsets = [0, 0, 0], sizes = [1, 8, 4], strides = [1, 1, 1]} : vector<5x8x4xf32> to vector<1x8x4xf32>
    %4 = vector.shape_cast %3 : vector<1x8x4xf32> to vector<8x4xf32>
    %5 = arith.mulf %4, %2 : vector<8x4xf32>
    %6 = vector.extract_strided_slice %0 {offsets = [1, 0, 0], sizes = [1, 8, 4], strides = [1, 1, 1]} : vector<5x8x4xf32> to vector<1x8x4xf32>
    %7 = vector.shape_cast %6 : vector<1x8x4xf32> to vector<8x4xf32>
    %8 = arith.mulf %7, %2 : vector<8x4xf32>
    %c0_2 = arith.constant 0 : index
    %c0_3 = arith.constant 0 : index
    %9 = vector.load %arg2[%c0_2, %c0_3] : memref<24x2xf32, #tpu.memory_space<vmem>>, vector<24x1xf32>
    %c0_4 = arith.constant 0 : index
    %c1 = arith.constant 1 : index
    %10 = vector.load %arg2[%c0_4, %c1] : memref<24x2xf32, #tpu.memory_space<vmem>>, vector<24x1xf32>
    %c0_5 = arith.constant 0 : index
    %c0_6 = arith.constant 0 : index
    %11 = vector.load %arg3[%c0_5, %c0_6] : memref<24x1xf32, #tpu.memory_space<vmem>>, vector<24x1xf32>
    %c0_7 = arith.constant 0 : index
    %c0_8 = arith.constant 0 : index
    %12 = vector.load %arg4[%c0_7, %c0_8] : memref<24x24xf32, #tpu.memory_space<vmem>>, vector<24x24xf32>
    %c0_9 = arith.constant 0 : index
    %c0_10 = arith.constant 0 : index
    %13 = vector.load %arg5[%c0_9, %c0_10] : memref<24x1xf32, #tpu.memory_space<vmem>>, vector<24x1xf32>
    %cst = arith.constant 0.000000e+00 : f32
    %14 = vector.broadcast %cst : f32 to vector<24x4xf32>
    %15 = vector.extract_strided_slice %5 {offsets = [0, 0], sizes = [1, 4], strides = [1, 1]} : vector<8x4xf32> to vector<1x4xf32>
    %16 = vector.broadcast %9 : vector<24x1xf32> to vector<24x4xf32>
    %17 = vector.broadcast %15 : vector<1x4xf32> to vector<24x4xf32>
    %18 = arith.mulf %16, %17 : vector<24x4xf32>
    %19 = vector.extract_strided_slice %8 {offsets = [0, 0], sizes = [1, 4], strides = [1, 1]} : vector<8x4xf32> to vector<1x4xf32>
    %20 = vector.broadcast %10 : vector<24x1xf32> to vector<24x4xf32>
    %21 = vector.broadcast %19 : vector<1x4xf32> to vector<24x4xf32>
    %22 = arith.mulf %20, %21 : vector<24x4xf32>
    %23 = arith.addf %18, %22 : vector<24x4xf32>
    %24 = vector.broadcast %11 : vector<24x1xf32> to vector<24x4xf32>
    %25 = arith.addf %23, %24 : vector<24x4xf32>
    %26 = math.tanh %25 : vector<24x4xf32>
    %cst_11 = arith.constant dense<0.000000e+00> : vector<24x4xf32>
    %27 = tpu.matmul %12, %26, %cst_11 {dimension_numbers = #tpu.dot_dimension_numbers<[1], [0], [0], [1], [0, 0, 1, 1], [], []>} : vector<24x24xf32>, vector<24x4xf32>, vector<24x4xf32> -> vector<24x4xf32>
    %28 = vector.broadcast %13 : vector<24x1xf32> to vector<24x4xf32>
    %29 = arith.addf %27, %28 : vector<24x4xf32>
    %30 = math.tanh %29 : vector<24x4xf32>
    %31 = arith.addf %14, %30 : vector<24x4xf32>
    %32 = vector.extract_strided_slice %5 {offsets = [1, 0], sizes = [1, 4], strides = [1, 1]} : vector<8x4xf32> to vector<1x4xf32>
    %33 = vector.broadcast %9 : vector<24x1xf32> to vector<24x4xf32>
    %34 = vector.broadcast %32 : vector<1x4xf32> to vector<24x4xf32>
    %35 = arith.mulf %33, %34 : vector<24x4xf32>
    %36 = vector.extract_strided_slice %8 {offsets = [1, 0], sizes = [1, 4], strides = [1, 1]} : vector<8x4xf32> to vector<1x4xf32>
    %37 = vector.broadcast %10 : vector<24x1xf32> to vector<24x4xf32>
    %38 = vector.broadcast %36 : vector<1x4xf32> to vector<24x4xf32>
    %39 = arith.mulf %37, %38 : vector<24x4xf32>
    %40 = arith.addf %35, %39 : vector<24x4xf32>
    %41 = vector.broadcast %11 : vector<24x1xf32> to vector<24x4xf32>
    %42 = arith.addf %40, %41 : vector<24x4xf32>
    %43 = math.tanh %42 : vector<24x4xf32>
    %cst_12 = arith.constant dense<0.000000e+00> : vector<24x4xf32>
    %44 = tpu.matmul %12, %43, %cst_12 {dimension_numbers = #tpu.dot_dimension_numbers<[1], [0], [0], [1], [0, 0, 1, 1], [], []>} : vector<24x24xf32>, vector<24x4xf32>, vector<24x4xf32> -> vector<24x4xf32>
    %45 = vector.broadcast %13 : vector<24x1xf32> to vector<24x4xf32>
    %46 = arith.addf %44, %45 : vector<24x4xf32>
    %47 = math.tanh %46 : vector<24x4xf32>
    %48 = arith.addf %31, %47 : vector<24x4xf32>
    %49 = vector.extract_strided_slice %5 {offsets = [2, 0], sizes = [1, 4], strides = [1, 1]} : vector<8x4xf32> to vector<1x4xf32>
    %50 = vector.broadcast %9 : vector<24x1xf32> to vector<24x4xf32>
    %51 = vector.broadcast %49 : vector<1x4xf32> to vector<24x4xf32>
    %52 = arith.mulf %50, %51 : vector<24x4xf32>
    %53 = vector.extract_strided_slice %8 {offsets = [2, 0], sizes = [1, 4], strides = [1, 1]} : vector<8x4xf32> to vector<1x4xf32>
    %54 = vector.broadcast %10 : vector<24x1xf32> to vector<24x4xf32>
    %55 = vector.broadcast %53 : vector<1x4xf32> to vector<24x4xf32>
    %56 = arith.mulf %54, %55 : vector<24x4xf32>
    %57 = arith.addf %52, %56 : vector<24x4xf32>
    %58 = vector.broadcast %11 : vector<24x1xf32> to vector<24x4xf32>
    %59 = arith.addf %57, %58 : vector<24x4xf32>
    %60 = math.tanh %59 : vector<24x4xf32>
    %cst_13 = arith.constant dense<0.000000e+00> : vector<24x4xf32>
    %61 = tpu.matmul %12, %60, %cst_13 {dimension_numbers = #tpu.dot_dimension_numbers<[1], [0], [0], [1], [0, 0, 1, 1], [], []>} : vector<24x24xf32>, vector<24x4xf32>, vector<24x4xf32> -> vector<24x4xf32>
    %62 = vector.broadcast %13 : vector<24x1xf32> to vector<24x4xf32>
    %63 = arith.addf %61, %62 : vector<24x4xf32>
    %64 = math.tanh %63 : vector<24x4xf32>
    %65 = arith.addf %48, %64 : vector<24x4xf32>
    %66 = vector.extract_strided_slice %5 {offsets = [3, 0], sizes = [1, 4], strides = [1, 1]} : vector<8x4xf32> to vector<1x4xf32>
    %67 = vector.broadcast %9 : vector<24x1xf32> to vector<24x4xf32>
    %68 = vector.broadcast %66 : vector<1x4xf32> to vector<24x4xf32>
    %69 = arith.mulf %67, %68 : vector<24x4xf32>
    %70 = vector.extract_strided_slice %8 {offsets = [3, 0], sizes = [1, 4], strides = [1, 1]} : vector<8x4xf32> to vector<1x4xf32>
    %71 = vector.broadcast %10 : vector<24x1xf32> to vector<24x4xf32>
    %72 = vector.broadcast %70 : vector<1x4xf32> to vector<24x4xf32>
    %73 = arith.mulf %71, %72 : vector<24x4xf32>
    %74 = arith.addf %69, %73 : vector<24x4xf32>
    %75 = vector.broadcast %11 : vector<24x1xf32> to vector<24x4xf32>
    %76 = arith.addf %74, %75 : vector<24x4xf32>
    %77 = math.tanh %76 : vector<24x4xf32>
    %cst_14 = arith.constant dense<0.000000e+00> : vector<24x4xf32>
    %78 = tpu.matmul %12, %77, %cst_14 {dimension_numbers = #tpu.dot_dimension_numbers<[1], [0], [0], [1], [0, 0, 1, 1], [], []>} : vector<24x24xf32>, vector<24x4xf32>, vector<24x4xf32> -> vector<24x4xf32>
    %79 = vector.broadcast %13 : vector<24x1xf32> to vector<24x4xf32>
    %80 = arith.addf %78, %79 : vector<24x4xf32>
    %81 = math.tanh %80 : vector<24x4xf32>
    %82 = arith.addf %65, %81 : vector<24x4xf32>
    %83 = vector.extract_strided_slice %5 {offsets = [4, 0], sizes = [1, 4], strides = [1, 1]} : vector<8x4xf32> to vector<1x4xf32>
    %84 = vector.broadcast %9 : vector<24x1xf32> to vector<24x4xf32>
    %85 = vector.broadcast %83 : vector<1x4xf32> to vector<24x4xf32>
    %86 = arith.mulf %84, %85 : vector<24x4xf32>
    %87 = vector.extract_strided_slice %8 {offsets = [4, 0], sizes = [1, 4], strides = [1, 1]} : vector<8x4xf32> to vector<1x4xf32>
    %88 = vector.broadcast %10 : vector<24x1xf32> to vector<24x4xf32>
    %89 = vector.broadcast %87 : vector<1x4xf32> to vector<24x4xf32>
    %90 = arith.mulf %88, %89 : vector<24x4xf32>
    %91 = arith.addf %86, %90 : vector<24x4xf32>
    %92 = vector.broadcast %11 : vector<24x1xf32> to vector<24x4xf32>
    %93 = arith.addf %91, %92 : vector<24x4xf32>
    %94 = math.tanh %93 : vector<24x4xf32>
    %cst_15 = arith.constant dense<0.000000e+00> : vector<24x4xf32>
    %95 = tpu.matmul %12, %94, %cst_15 {dimension_numbers = #tpu.dot_dimension_numbers<[1], [0], [0], [1], [0, 0, 1, 1], [], []>} : vector<24x24xf32>, vector<24x4xf32>, vector<24x4xf32> -> vector<24x4xf32>
    %96 = vector.broadcast %13 : vector<24x1xf32> to vector<24x4xf32>
    %97 = arith.addf %95, %96 : vector<24x4xf32>
    %98 = math.tanh %97 : vector<24x4xf32>
    %99 = arith.addf %82, %98 : vector<24x4xf32>
    %100 = vector.extract_strided_slice %5 {offsets = [5, 0], sizes = [1, 4], strides = [1, 1]} : vector<8x4xf32> to vector<1x4xf32>
    %101 = vector.broadcast %9 : vector<24x1xf32> to vector<24x4xf32>
    %102 = vector.broadcast %100 : vector<1x4xf32> to vector<24x4xf32>
    %103 = arith.mulf %101, %102 : vector<24x4xf32>
    %104 = vector.extract_strided_slice %8 {offsets = [5, 0], sizes = [1, 4], strides = [1, 1]} : vector<8x4xf32> to vector<1x4xf32>
    %105 = vector.broadcast %10 : vector<24x1xf32> to vector<24x4xf32>
    %106 = vector.broadcast %104 : vector<1x4xf32> to vector<24x4xf32>
    %107 = arith.mulf %105, %106 : vector<24x4xf32>
    %108 = arith.addf %103, %107 : vector<24x4xf32>
    %109 = vector.broadcast %11 : vector<24x1xf32> to vector<24x4xf32>
    %110 = arith.addf %108, %109 : vector<24x4xf32>
    %111 = math.tanh %110 : vector<24x4xf32>
    %cst_16 = arith.constant dense<0.000000e+00> : vector<24x4xf32>
    %112 = tpu.matmul %12, %111, %cst_16 {dimension_numbers = #tpu.dot_dimension_numbers<[1], [0], [0], [1], [0, 0, 1, 1], [], []>} : vector<24x24xf32>, vector<24x4xf32>, vector<24x4xf32> -> vector<24x4xf32>
    %113 = vector.broadcast %13 : vector<24x1xf32> to vector<24x4xf32>
    %114 = arith.addf %112, %113 : vector<24x4xf32>
    %115 = math.tanh %114 : vector<24x4xf32>
    %116 = arith.addf %99, %115 : vector<24x4xf32>
    %117 = vector.extract_strided_slice %5 {offsets = [6, 0], sizes = [1, 4], strides = [1, 1]} : vector<8x4xf32> to vector<1x4xf32>
    %118 = vector.broadcast %9 : vector<24x1xf32> to vector<24x4xf32>
    %119 = vector.broadcast %117 : vector<1x4xf32> to vector<24x4xf32>
    %120 = arith.mulf %118, %119 : vector<24x4xf32>
    %121 = vector.extract_strided_slice %8 {offsets = [6, 0], sizes = [1, 4], strides = [1, 1]} : vector<8x4xf32> to vector<1x4xf32>
    %122 = vector.broadcast %10 : vector<24x1xf32> to vector<24x4xf32>
    %123 = vector.broadcast %121 : vector<1x4xf32> to vector<24x4xf32>
    %124 = arith.mulf %122, %123 : vector<24x4xf32>
    %125 = arith.addf %120, %124 : vector<24x4xf32>
    %126 = vector.broadcast %11 : vector<24x1xf32> to vector<24x4xf32>
    %127 = arith.addf %125, %126 : vector<24x4xf32>
    %128 = math.tanh %127 : vector<24x4xf32>
    %cst_17 = arith.constant dense<0.000000e+00> : vector<24x4xf32>
    %129 = tpu.matmul %12, %128, %cst_17 {dimension_numbers = #tpu.dot_dimension_numbers<[1], [0], [0], [1], [0, 0, 1, 1], [], []>} : vector<24x24xf32>, vector<24x4xf32>, vector<24x4xf32> -> vector<24x4xf32>
    %130 = vector.broadcast %13 : vector<24x1xf32> to vector<24x4xf32>
    %131 = arith.addf %129, %130 : vector<24x4xf32>
    %132 = math.tanh %131 : vector<24x4xf32>
    %133 = arith.addf %116, %132 : vector<24x4xf32>
    %134 = vector.extract_strided_slice %5 {offsets = [7, 0], sizes = [1, 4], strides = [1, 1]} : vector<8x4xf32> to vector<1x4xf32>
    %135 = vector.broadcast %9 : vector<24x1xf32> to vector<24x4xf32>
    %136 = vector.broadcast %134 : vector<1x4xf32> to vector<24x4xf32>
    %137 = arith.mulf %135, %136 : vector<24x4xf32>
    %138 = vector.extract_strided_slice %8 {offsets = [7, 0], sizes = [1, 4], strides = [1, 1]} : vector<8x4xf32> to vector<1x4xf32>
    %139 = vector.broadcast %10 : vector<24x1xf32> to vector<24x4xf32>
    %140 = vector.broadcast %138 : vector<1x4xf32> to vector<24x4xf32>
    %141 = arith.mulf %139, %140 : vector<24x4xf32>
    %142 = arith.addf %137, %141 : vector<24x4xf32>
    %143 = vector.broadcast %11 : vector<24x1xf32> to vector<24x4xf32>
    %144 = arith.addf %142, %143 : vector<24x4xf32>
    %145 = math.tanh %144 : vector<24x4xf32>
    %cst_18 = arith.constant dense<0.000000e+00> : vector<24x4xf32>
    %146 = tpu.matmul %12, %145, %cst_18 {dimension_numbers = #tpu.dot_dimension_numbers<[1], [0], [0], [1], [0, 0, 1, 1], [], []>} : vector<24x24xf32>, vector<24x4xf32>, vector<24x4xf32> -> vector<24x4xf32>
    %147 = vector.broadcast %13 : vector<24x1xf32> to vector<24x4xf32>
    %148 = arith.addf %146, %147 : vector<24x4xf32>
    %149 = math.tanh %148 : vector<24x4xf32>
    %150 = arith.addf %133, %149 : vector<24x4xf32>
    %c0_19 = arith.constant 0 : index
    %c0_20 = arith.constant 0 : index
    %151 = vector.load %arg6[%c0_19, %c0_20] : memref<2x24xf32, #tpu.memory_space<vmem>>, vector<2x24xf32>
    %cst_21 = arith.constant dense<0.000000e+00> : vector<2x4xf32>
    %152 = tpu.matmul %151, %150, %cst_21 {dimension_numbers = #tpu.dot_dimension_numbers<[1], [0], [0], [1], [0, 0, 1, 1], [], []>} : vector<2x24xf32>, vector<24x4xf32>, vector<2x4xf32> -> vector<2x4xf32>
    %c0_22 = arith.constant 0 : index
    %c0_23 = arith.constant 0 : index
    %153 = vector.load %arg7[%c0_22, %c0_23] : memref<2x1xf32, #tpu.memory_space<vmem>>, vector<2x1xf32>
    %cst_24 = arith.constant 8.000000e+00 : f32
    %154 = vector.broadcast %cst_24 : f32 to vector<2x1xf32>
    %155 = arith.mulf %154, %153 : vector<2x1xf32>
    %156 = vector.broadcast %155 : vector<2x1xf32> to vector<2x4xf32>
    %157 = arith.addf %152, %156 : vector<2x4xf32>
    %c0_25 = arith.constant 0 : index
    %c0_26 = arith.constant 0 : index
    %158 = vector.load %arg8[%c0_25, %c0_26] : memref<2x4xf32, #tpu.memory_space<vmem>>, vector<2x4xf32>
    tpu.vector_store %arg8[%c0_25, %c0_26], %157 {strides = array<i32>} : memref<2x4xf32, #tpu.memory_space<vmem>>, vector<2x4xf32>,
    return
  }
  func.func @transform_0(%arg0: i32) -> (i32, i32, i32) {
    %c0_i32 = arith.constant 0 : i32
    %c0_i32_0 = arith.constant 0 : i32
    %c0_i32_1 = arith.constant 0 : i32
    return %c0_i32, %c0_i32_0, %arg0 : i32, i32, i32
  }
  func.func @transform_1(%arg0: i32) -> (i32, i32) {
    %c0_i32 = arith.constant 0 : i32
    %c0_i32_0 = arith.constant 0 : i32
    %c0_i32_1 = arith.constant 0 : i32
    return %c0_i32, %c0_i32_0 : i32, i32
  }
  func.func @transform_2(%arg0: i32) -> (i32, i32) {
    %c0_i32 = arith.constant 0 : i32
    %c0_i32_0 = arith.constant 0 : i32
    %c0_i32_1 = arith.constant 0 : i32
    return %c0_i32, %c0_i32_0 : i32, i32
  }
  func.func @transform_3(%arg0: i32) -> (i32, i32) {
    %c0_i32 = arith.constant 0 : i32
    %c0_i32_0 = arith.constant 0 : i32
    %c0_i32_1 = arith.constant 0 : i32
    return %c0_i32, %c0_i32_0 : i32, i32
  }
  func.func @transform_4(%arg0: i32) -> (i32, i32) {
    %c0_i32 = arith.constant 0 : i32
    %c0_i32_0 = arith.constant 0 : i32
    %c0_i32_1 = arith.constant 0 : i32
    return %c0_i32, %c0_i32_0 : i32, i32
  }
  func.func @transform_5(%arg0: i32) -> (i32, i32) {
    %c0_i32 = arith.constant 0 : i32
    %c0_i32_0 = arith.constant 0 : i32
    %c0_i32_1 = arith.constant 0 : i32
    return %c0_i32, %c0_i32_0 : i32, i32
  }
  func.func @transform_6(%arg0: i32) -> (i32, i32) {
    %c0_i32 = arith.constant 0 : i32
    %c0_i32_0 = arith.constant 0 : i32
    %c0_i32_1 = arith.constant 0 : i32
    return %c0_i32, %c0_i32_0 : i32, i32
  }
  func.func @transform_7(%arg0: i32) -> (i32, i32) {
    %c0_i32 = arith.constant 0 : i32
    %c0_i32_0 = arith.constant 0 : i32
    return %c0_i32, %arg0 : i32, i32
  }
}

</mosaic_0001>

<llo_original>
// kernel: nn_set_embedding.1
$region0: #{nn_set_embedding.1}
  #allocation0 [shape = 'u32[]', space=smem, size = 0x4, offset = 0x4, fixed_abs, tag = 'smem constant byte address 0x4 - core index']
  #allocation1 [shape = 'u32[144,128]{1,0:T(1,128)}', space=vmem, size = 0x12000, scoped, tag = 'internal scratch']
  %s0 = inlined_call_operand.vmem [shape: f32[5,8,4], index: 0, kind: input, shape index: {}]
  %s1 = inlined_call_operand.vmem [shape: f32[24,2], index: 1, kind: input, shape index: {}]
  %s2 = inlined_call_operand.vmem [shape: f32[24,1], index: 2, kind: input, shape index: {}]
  %s3 = inlined_call_operand.vmem [shape: f32[24,24], index: 3, kind: input, shape index: {}]
  %s4 = inlined_call_operand.vmem [shape: f32[24,1], index: 4, kind: input, shape index: {}]
  %s5 = inlined_call_operand.vmem [shape: f32[2,24], index: 5, kind: input, shape index: {}]
  %s6 = inlined_call_operand.vmem [shape: f32[2,1], index: 6, kind: input, shape index: {}]
  %s7 = inlined_call_operand.vmem [shape: f32[2,4], index: 7, kind: output, shape index: {}]
  %s8 = sld [smem:[#allocation0]]
  $region38: #{nn_set_embedding.1} parent=0
    _
  %s10 = ssub.s32 1, %s8
  %s11 = scalar_select 0, %s10, %s8
  // Predicated region
  $region2: #{nn_set_embedding.1} parent=0 // pred_check
    _
  $region3: #{nn_set_embedding.1} parent=0 // pred_check_branch
    %13 = sbr.rel (0) target = $region5
  $region4: #{nn_set_embedding.1} parent=0 // pred_region
    _
  $region5: #{nn_set_embedding.1} parent=0 // pred_fallthru
    _
  // Predicated region
  $region6: #{nn_set_embedding.1} parent=0 // pred_check
    _
  $region7: #{nn_set_embedding.1} parent=0 // pred_check_branch
    %15 = sbr.rel (0) target = $region9
  $region8: #{nn_set_embedding.1} parent=0 // pred_region
    _
  $region9: #{nn_set_embedding.1} parent=0 // pred_fallthru
    _
  // Predicated region
  $region10: #{nn_set_embedding.1} parent=0 // pred_check
    _
  $region11: #{nn_set_embedding.1} parent=0 // pred_check_branch
    %17 = sbr.rel (0) target = $region13
  $region12: #{nn_set_embedding.1} parent=0 // pred_region
    _
  $region13: #{nn_set_embedding.1} parent=0 // pred_fallthru
    _
  // Predicated region
  $region14: #{nn_set_embedding.1} parent=0 // pred_check
    _
  $region15: #{nn_set_embedding.1} parent=0 // pred_check_branch
    %19 = sbr.rel (0) target = $region17
  $region16: #{nn_set_embedding.1} parent=0 // pred_region
    _
  $region17: #{nn_set_embedding.1} parent=0 // pred_fallthru
    _
  // Predicated region
  $region18: #{nn_set_embedding.1} parent=0 // pred_check
    _
  $region19: #{nn_set_embedding.1} parent=0 // pred_check_branch
    %21 = sbr.rel (0) target = $region21
  $region20: #{nn_set_embedding.1} parent=0 // pred_region
    _
  $region21: #{nn_set_embedding.1} parent=0 // pred_fallthru
    _
  // Predicated region
  $region22: #{nn_set_embedding.1} parent=0 // pred_check
    _
  $region23: #{nn_set_embedding.1} parent=0 // pred_check_branch
    %23 = sbr.rel (0) target = $region25
  $region24: #{nn_set_embedding.1} parent=0 // pred_region
    _
  $region25: #{nn_set_embedding.1} parent=0 // pred_fallthru
    _
  // Predicated region
  $region26: #{nn_set_embedding.1} parent=0 // pred_check
    _
  $region27: #{nn_set_embedding.1} parent=0 // pred_check_branch
    %25 = sbr.rel (0) target = $region29
  $region28: #{nn_set_embedding.1} parent=0 // pred_region
    _
  $region29: #{nn_set_embedding.1} parent=0 // pred_fallthru
    _
  %v26 = vld [vmem:[%s0] sm:$0xff]
  %v27 = vld [vmem:[%s0 + $0x8] sm:$0xff]
  %v28 = vld [vmem:[%s0 + $0x18] sm:$0xff]
  %v29 = vmul.f32 %v26, %v28
  %v30 = vmul.f32 %v27, %v28
  %v31 = vld [vmem:[%s1] sm:$0xff]
  %v32 = vld [vmem:[%s1 + $0x8] sm:$0xff]
  %v33 = vld [vmem:[%s1 + $0x10] sm:$0xff]
  %v34 = vld [vmem:[%s2] sm:$0xff]
  %v35 = vld [vmem:[%s2 + $0x8] sm:$0xff]
  %v36 = vld [vmem:[%s2 + $0x10] sm:$0xff]
  %v37 = vld [vmem:[%s3] sm:$0xff]
  %v38 = vld [vmem:[%s3 + $0x8] sm:$0xff]
  %v39 = vld [vmem:[%s3 + $0x10] sm:$0xff]
  %v40 = vld [vmem:[%s4] sm:$0xff]
  %v41 = vld [vmem:[%s4 + $0x8] sm:$0xff]
  %v42 = vld [vmem:[%s4 + $0x10] sm:$0xff]
  %44 = vset.pattern.permute.xlu0 0
  %45 = vperm.xlu0 %44, %v31
  %v46 = vpop.permute.xlu0 %45
  %49 = vset.pattern.permute.xlu0 0
  %50 = vperm.xlu0 %49, %v32
  %v51 = vpop.permute.xlu0 %50
  %54 = vset.pattern.permute.xlu0 0
  %55 = vperm.xlu0 %54, %v33
  %v56 = vpop.permute.xlu0 %55
  %v58 = vlaneseq
  %v59 = vshrl.u32 %v58, 7
  %v60 = vsub.s32 0, %v59
  %v61 = vrot.slane %v29, %v60
  %v62 = vmul.f32 %v46, %v61
  %v63 = vmul.f32 %v51, %v61
  %v64 = vmul.f32 %v56, %v61
  %65 = vset.pattern.permute.xlu0 1
  %66 = vperm.xlu0 %65, %v31
  %v67 = vpop.permute.xlu0 %66
  %69 = vset.pattern.permute.xlu0 1
  %70 = vperm.xlu0 %69, %v32
  %v71 = vpop.permute.xlu0 %70
  %73 = vset.pattern.permute.xlu0 1
  %74 = vperm.xlu0 %73, %v33
  %v75 = vpop.permute.xlu0 %74
  %v77 = vlaneseq
  %v78 = vshrl.u32 %v77, 7
  %v79 = vsub.s32 0, %v78
  %v80 = vrot.slane %v30, %v79
  %v81 = vmul.f32 %v67, %v80
  %v82 = vmul.f32 %v71, %v80
  %v83 = vmul.f32 %v75, %v80
  %v84 = vadd.f32 %v62, %v81
  %v85 = vadd.f32 %v63, %v82
  %v86 = vadd.f32 %v64, %v83
  %88 = vset.pattern.permute.xlu0 0
  %89 = vperm.xlu0 %88, %v34
  %v90 = vpop.permute.xlu0 %89
  %93 = vset.pattern.permute.xlu0 0
  %94 = vperm.xlu0 %93, %v35
  %v95 = vpop.permute.xlu0 %94
  %98 = vset.pattern.permute.xlu0 0
  %99 = vperm.xlu0 %98, %v36
  %v100 = vpop.permute.xlu0 %99
  %v102 = vadd.f32 %v84, %v90
  %v103 = vadd.f32 %v85, %v95
  %v104 = vadd.f32 %v86, %v100
  %v105 = vtanh.pop %v102
  %v106 = vtanh.pop %v103
  %v107 = vtanh.pop %v104
  %109 = vset.pattern.permute.xlu0 0
  %110 = vperm.xlu0 %109, %v40
  %v111 = vpop.permute.xlu0 %110
  %114 = vset.pattern.permute.xlu0 0
  %115 = vperm.xlu0 %114, %v41
  %v116 = vpop.permute.xlu0 %115
  %119 = vset.pattern.permute.xlu0 0
  %120 = vperm.xlu0 %119, %v42
  %v121 = vpop.permute.xlu0 %120
  %vm123 = vcmask 195584
  %v125 = vsel %vm123, %v37, 0
  %v128 = vsel %vm123, %v38, 0
  %v131 = vsel %vm123, %v39, 0
  %133 = vmatprep.subr.mxu0 0.0
  %134 = vmatpush1.msra.mxu0 %v105
  %135 = vmatprep.subr.mxu0 0.0
  %136 = vmatpush1.msra.mxu0 %v106
  %137 = vmatprep.subr.mxu0 0.0
  %138 = vmatpush1.msra.mxu0 %v107
  %139 = vmatprep.subr.mxu0 0.0
  %140 = vmatpush1.msra.mxu0 0.0
  %141 = vmatprep.subr.mxu0 0.0
  %142 = vmatpush1.msra.mxu0 0.0
  %143 = vmatprep.subr.mxu0 0.0
  %144 = vmatpush1.msra.mxu0 0.0
  %145 = vmatprep.subr.mxu0 0.0
  %146 = vmatpush1.msra.mxu0 0.0
  %147 = vmatprep.subr.mxu0 0.0
  %148 = vmatpush1.msra.mxu0 0.0
  %149 = vmatprep.subr.mxu0 0.0
  %150 = vmatpush1.msra.mxu0 0.0
  %151 = vmatprep.subr.mxu0 0.0
  %152 = vmatpush1.msra.mxu0 0.0
  %153 = vmatprep.subr.mxu0 0.0
  %154 = vmatpush1.msra.mxu0 0.0
  %155 = vmatprep.subr.mxu0 0.0
  %156 = vmatpush1.msra.mxu0 0.0
  %157 = vmatprep.subr.mxu0 0.0
  %158 = vmatpush1.msra.mxu0 0.0
  %159 = vmatprep.subr.mxu0 0.0
  %160 = vmatpush1.msra.mxu0 0.0
  %161 = vmatprep.subr.mxu0 0.0
  %162 = vmatpush1.msra.mxu0 0.0
  %163 = vmatprep.subr.mxu0 0.0
  %164 = vmatpush1.msra.mxu0 0.0
  %165 = vmatprep.subr.mxu0 0.0
  %166 = vmatpush1.msra.mxu0 0.0
  %167 = vmatprep.subr.mxu0 0.0
  %168 = vmatpush1.msra.mxu0 0.0
  %169 = vmatprep.subr.mxu0 0.0
  %170 = vmatpush1.msra.mxu0 0.0
  %171 = vmatprep.subr.mxu0 0.0
  %172 = vmatpush1.msra.mxu0 0.0
  %173 = vmatprep.subr.mxu0 0.0
  %174 = vmatpush1.msra.mxu0 0.0
  %175 = vmatprep.subr.mxu0 0.0
  %176 = vmatpush1.msra.mxu0 0.0
  %177 = vmatprep.subr.mxu0 0.0
  %178 = vmatpush1.msra.mxu0 0.0
  %179 = vmatprep.subr.mxu0 0.0
  %180 = vmatpush1.msra.mxu0 0.0
  %181 = vmatprep.subr.mxu0 0.0
  %182 = vmatpush1.msra.mxu0 0.0
  %183 = vmatprep.subr.mxu0 0.0
  %184 = vmatpush1.msra.mxu0 0.0
  %185 = vmatprep.subr.mxu0 0.0
  %186 = vmatpush1.msra.mxu0 0.0
  %187 = vmatprep.subr.mxu0 0.0
  %188 = vmatpush1.msra.mxu0 0.0
  %189 = vmatprep.subr.mxu0 0.0
  %190 = vmatpush1.msra.mxu0 0.0
  %191 = vmatprep.subr.mxu0 0.0
  %192 = vmatpush1.msra.mxu0 0.0
  %193 = vmatprep.subr.mxu0 0.0
  %194 = vmatpush1.msra.mxu0 0.0
  %195 = vmatprep.subr.mxu0 0.0
  %196 = vmatpush1.msra.mxu0 0.0
  %197 = vmatprep.mubr.f32.mxu0 0.0
  %198 = vmatmul.mubr.f32.gmra.mrb[0].mxu0 %v125
  %v199 = vpop.f32.mrb[0].mxu0
  %v200 = vadd.f32 %v111, %v199
  %v201 = vpop.f32.mrb[0].mxu0
  %202 = vmatprep.mubr.f32.mxu0 0.0
  %203 = vmatmul.mubr.f32.gmra.mrb[0].mxu0 %v128
  %v204 = vpop.f32.mrb[0].mxu0
  %v205 = vadd.f32 %v116, %v204
  %v206 = vpop.f32.mrb[0].mxu0
  %207 = vmatprep.mubr.f32.mxu0 0.0
  %208 = vmatmul.mubr.f32.gmra.mrb[0].mxu0 %v131
  %v209 = vpop.f32.mrb[0].mxu0
  %v210 = vadd.f32 %v121, %v209
  %v211 = vpop.f32.mrb[0].mxu0
  %212 = vdwg.mxu0
  %v213 = vtanh.pop %v200
  %v214 = vtanh.pop %v205
  %v215 = vtanh.pop %v210
  %v216 = vadd.f32 %v213, 0.0
  %v217 = vadd.f32 %v214, 0.0
  %v218 = vadd.f32 %v215, 0.0
  %v219 = vlaneseq
  %v220 = vshrl.u32 %v219, 7
  %v221 = vsub.s32 1, %v220
  %v222 = vrot.slane %v29, %v221
  %v223 = vmul.f32 %v46, %v222
  %v224 = vmul.f32 %v51, %v222
  %v225 = vmul.f32 %v56, %v222
  %v226 = vlaneseq
  %v227 = vshrl.u32 %v226, 7
  %v228 = vsub.s32 1, %v227
  %v229 = vrot.slane %v30, %v228
  %v230 = vmul.f32 %v67, %v229
  %v231 = vmul.f32 %v71, %v229
  %v232 = vmul.f32 %v75, %v229
  %v233 = vadd.f32 %v223, %v230
  %v234 = vadd.f32 %v224, %v231
  %v235 = vadd.f32 %v225, %v232
  %v236 = vadd.f32 %v233, %v90
  %v237 = vadd.f32 %v234, %v95
  %v238 = vadd.f32 %v235, %v100
  %v239 = vtanh.pop %v236
  %v240 = vtanh.pop %v237
  %v241 = vtanh.pop %v238
  %242 = vmatprep.subr.mxu0 0.0
  %243 = vmatpush1.msra.mxu0 %v239
  %244 = vmatprep.subr.mxu0 0.0
  %245 = vmatpush1.msra.mxu0 %v240
  %246 = vmatprep.subr.mxu0 0.0
  %247 = vmatpush1.msra.mxu0 %v241
  %248 = vmatprep.subr.mxu0 0.0
  %249 = vmatpush1.msra.mxu0 0.0
  %250 = vmatprep.subr.mxu0 0.0
  %251 = vmatpush1.msra.mxu0 0.0
  %252 = vmatprep.subr.mxu0 0.0
  %253 = vmatpush1.msra.mxu0 0.0
  %254 = vmatprep.subr.mxu0 0.0
  %255 = vmatpush1.msra.mxu0 0.0
  %256 = vmatprep.subr.mxu0 0.0
  %257 = vmatpush1.msra.mxu0 0.0
  %258 = vmatprep.subr.mxu0 0.0
  %259 = vmatpush1.msra.mxu0 0.0
  %260 = vmatprep.subr.mxu0 0.0
  %261 = vmatpush1.msra.mxu0 0.0
  %262 = vmatprep.subr.mxu0 0.0
  %263 = vmatpush1.msra.mxu0 0.0
  %264 = vmatprep.subr.mxu0 0.0
  %265 = vmatpush1.msra.mxu0 0.0
  %266 = vmatprep.subr.mxu0 0.0
  %267 = vmatpush1.msra.mxu0 0.0
  %268 = vmatprep.subr.mxu0 0.0
  %269 = vmatpush1.msra.mxu0 0.0
  %270 = vmatprep.subr.mxu0 0.0
  %271 = vmatpush1.msra.mxu0 0.0
  %272 = vmatprep.subr.mxu0 0.0
  %273 = vmatpush1.msra.mxu0 0.0
  %274 = vmatprep.subr.mxu0 0.0
  %275 = vmatpush1.msra.mxu0 0.0
  %276 = vmatprep.subr.mxu0 0.0
  %277 = vmatpush1.msra.mxu0 0.0
  %278 = vmatprep.subr.mxu0 0.0
  %279 = vmatpush1.msra.mxu0 0.0
  %280 = vmatprep.subr.mxu0 0.0
  %281 = vmatpush1.msra.mxu0 0.0
  %282 = vmatprep.subr.mxu0 0.0
  %283 = vmatpush1.msra.mxu0 0.0
  %284 = vmatprep.subr.mxu0 0.0
  %285 = vmatpush1.msra.mxu0 0.0
  %286 = vmatprep.subr.mxu0 0.0
  %287 = vmatpush1.msra.mxu0 0.0
  %288 = vmatprep.subr.mxu0 0.0
  %289 = vmatpush1.msra.mxu0 0.0
  %290 = vmatprep.subr.mxu0 0.0
  %291 = vmatpush1.msra.mxu0 0.0
  %292 = vmatprep.subr.mxu0 0.0
  %293 = vmatpush1.msra.mxu0 0.0
  %294 = vmatprep.subr.mxu0 0.0
  %295 = vmatpush1.msra.mxu0 0.0
  %296 = vmatprep.subr.mxu0 0.0
  %297 = vmatpush1.msra.mxu0 0.0
  %298 = vmatprep.subr.mxu0 0.0
  %299 = vmatpush1.msra.mxu0 0.0
  %300 = vmatprep.subr.mxu0 0.0
  %301 = vmatpush1.msra.mxu0 0.0
  %302 = vmatprep.subr.mxu0 0.0
  %303 = vmatpush1.msra.mxu0 0.0
  %304 = vmatprep.subr.mxu0 0.0
  %305 = vmatpush1.msra.mxu0 0.0
  %306 = vmatprep.mubr.f32.mxu0 0.0
  %307 = vmatmul.mubr.f32.gmra.mrb[0].mxu0 %v125
  %v308 = vpop.f32.mrb[0].mxu0
  %v309 = vadd.f32 %v111, %v308
  %v310 = vpop.f32.mrb[0].mxu0
  %311 = vmatprep.mubr.f32.mxu0 0.0
  %312 = vmatmul.mubr.f32.gmra.mrb[0].mxu0 %v128
  %v313 = vpop.f32.mrb[0].mxu0
  %v314 = vadd.f32 %v116, %v313
  %v315 = vpop.f32.mrb[0].mxu0
  %316 = vmatprep.mubr.f32.mxu0 0.0
  %317 = vmatmul.mubr.f32.gmra.mrb[0].mxu0 %v131
  %v318 = vpop.f32.mrb[0].mxu0
  %v319 = vadd.f32 %v121, %v318
  %v320 = vpop.f32.mrb[0].mxu0
  %321 = vdwg.mxu0
  %v322 = vtanh.pop %v309
  %v323 = vtanh.pop %v314
  %v324 = vtanh.pop %v319
  %v325 = vadd.f32 %v216, %v322
  %v326 = vadd.f32 %v217, %v323
  %v327 = vadd.f32 %v218, %v324
  %v328 = vlaneseq
  %v329 = vshrl.u32 %v328, 7
  %v330 = vsub.s32 2, %v329
  %v331 = vrot.slane %v29, %v330
  %v332 = vmul.f32 %v46, %v331
  %v333 = vmul.f32 %v51, %v331
  %v334 = vmul.f32 %v56, %v331
  %v335 = vlaneseq
  %v336 = vshrl.u32 %v335, 7
  %v337 = vsub.s32 2, %v336
  %v338 = vrot.slane %v30, %v337
  %v339 = vmul.f32 %v67, %v338
  %v340 = vmul.f32 %v71, %v338
  %v341 = vmul.f32 %v75, %v338
  %v342 = vadd.f32 %v332, %v339
  %v343 = vadd.f32 %v333, %v340
  %v344 = vadd.f32 %v334, %v341
  %v345 = vadd.f32 %v342, %v90
  %v346 = vadd.f32 %v343, %v95
  %v347 = vadd.f32 %v344, %v100
  %v348 = vtanh.pop %v345
  %v349 = vtanh.pop %v346
  %v350 = vtanh.pop %v347
  %351 = vmatprep.subr.mxu0 0.0
  %352 = vmatpush1.msra.mxu0 %v348
  %353 = vmatprep.subr.mxu0 0.0
  %354 = vmatpush1.msra.mxu0 %v349
  %355 = vmatprep.subr.mxu0 0.0
  %356 = vmatpush1.msra.mxu0 %v350
  %357 = vmatprep.subr.mxu0 0.0
  %358 = vmatpush1.msra.mxu0 0.0
  %359 = vmatprep.subr.mxu0 0.0
  %360 = vmatpush1.msra.mxu0 0.0
  %361 = vmatprep.subr.mxu0 0.0
  %362 = vmatpush1.msra.mxu0 0.0
  %363 = vmatprep.subr.mxu0 0.0
  %364 = vmatpush1.msra.mxu0 0.0
  %365 = vmatprep.subr.mxu0 0.0
  %366 = vmatpush1.msra.mxu0 0.0
  %367 = vmatprep.subr.mxu0 0.0
  %368 = vmatpush1.msra.mxu0 0.0
  %369 = vmatprep.subr.mxu0 0.0
  %370 = vmatpush1.msra.mxu0 0.0
  %371 = vmatprep.subr.mxu0 0.0
  %372 = vmatpush1.msra.mxu0 0.0
  %373 = vmatprep.subr.mxu0 0.0
  %374 = vmatpush1.msra.mxu0 0.0
  %375 = vmatprep.subr.mxu0 0.0
  %376 = vmatpush1.msra.mxu0 0.0
  %377 = vmatprep.subr.mxu0 0.0
  %378 = vmatpush1.msra.mxu0 0.0
  %379 = vmatprep.subr.mxu0 0.0
  %380 = vmatpush1.msra.mxu0 0.0
  %381 = vmatprep.subr.mxu0 0.0
  %382 = vmatpush1.msra.mxu0 0.0
  %383 = vmatprep.subr.mxu0 0.0
  %384 = vmatpush1.msra.mxu0 0.0
  %385 = vmatprep.subr.mxu0 0.0
  %386 = vmatpush1.msra.mxu0 0.0
  %387 = vmatprep.subr.mxu0 0.0
  %388 = vmatpush1.msra.mxu0 0.0
  %389 = vmatprep.subr.mxu0 0.0
  %390 = vmatpush1.msra.mxu0 0.0
  %391 = vmatprep.subr.mxu0 0.0
  %392 = vmatpush1.msra.mxu0 0.0
  %393 = vmatprep.subr.mxu0 0.0
  %394 = vmatpush1.msra.mxu0 0.0
  %395 = vmatprep.subr.mxu0 0.0
  %396 = vmatpush1.msra.mxu0 0.0
  %397 = vmatprep.subr.mxu0 0.0
  %398 = vmatpush1.msra.mxu0 0.0
  %399 = vmatprep.subr.mxu0 0.0
  %400 = vmatpush1.msra.mxu0 0.0
  %401 = vmatprep.subr.mxu0 0.0
  %402 = vmatpush1.msra.mxu0 0.0
  %403 = vmatprep.subr.mxu0 0.0
  %404 = vmatpush1.msra.mxu0 0.0
  %405 = vmatprep.subr.mxu0 0.0
  %406 = vmatpush1.msra.mxu0 0.0
  %407 = vmatprep.subr.mxu0 0.0
  %408 = vmatpush1.msra.mxu0 0.0
  %409 = vmatprep.subr.mxu0 0.0
  %410 = vmatpush1.msra.mxu0 0.0
  %411 = vmatprep.subr.mxu0 0.0
  %412 = vmatpush1.msra.mxu0 0.0
  %413 = vmatprep.subr.mxu0 0.0
  %414 = vmatpush1.msra.mxu0 0.0
  %415 = vmatprep.mubr.f32.mxu0 0.0
  %416 = vmatmul.mubr.f32.gmra.mrb[0].mxu0 %v125
  %v417 = vpop.f32.mrb[0].mxu0
  %v418 = vadd.f32 %v111, %v417
  %v419 = vpop.f32.mrb[0].mxu0
  %420 = vmatprep.mubr.f32.mxu0 0.0
  %421 = vmatmul.mubr.f32.gmra.mrb[0].mxu0 %v128
  %v422 = vpop.f32.mrb[0].mxu0
  %v423 = vadd.f32 %v116, %v422
  %v424 = vpop.f32.mrb[0].mxu0
  %425 = vmatprep.mubr.f32.mxu0 0.0
  %426 = vmatmul.mubr.f32.gmra.mrb[0].mxu0 %v131
  %v427 = vpop.f32.mrb[0].mxu0
  %v428 = vadd.f32 %v121, %v427
  %v429 = vpop.f32.mrb[0].mxu0
  %430 = vdwg.mxu0
  %v431 = vtanh.pop %v418
  %v432 = vtanh.pop %v423
  %v433 = vtanh.pop %v428
  %v434 = vadd.f32 %v325, %v431
  %v435 = vadd.f32 %v326, %v432
  %v436 = vadd.f32 %v327, %v433
  %v437 = vlaneseq
  %v438 = vshrl.u32 %v437, 7
  %v439 = vsub.s32 3, %v438
  %v440 = vrot.slane %v29, %v439
  %v441 = vmul.f32 %v46, %v440
  %v442 = vmul.f32 %v51, %v440
  %v443 = vmul.f32 %v56, %v440
  %v444 = vlaneseq
  %v445 = vshrl.u32 %v444, 7
  %v446 = vsub.s32 3, %v445
  %v447 = vrot.slane %v30, %v446
  %v448 = vmul.f32 %v67, %v447
  %v449 = vmul.f32 %v71, %v447
  %v450 = vmul.f32 %v75, %v447
  %v451 = vadd.f32 %v441, %v448
  %v452 = vadd.f32 %v442, %v449
  %v453 = vadd.f32 %v443, %v450
  %v454 = vadd.f32 %v451, %v90
  %v455 = vadd.f32 %v452, %v95
  %v456 = vadd.f32 %v453, %v100
  %v457 = vtanh.pop %v454
  %v458 = vtanh.pop %v455
  %v459 = vtanh.pop %v456
  %460 = vmatprep.subr.mxu0 0.0
  %461 = vmatpush1.msra.mxu0 %v457
  %462 = vmatprep.subr.mxu0 0.0
  %463 = vmatpush1.msra.mxu0 %v458
  %464 = vmatprep.subr.mxu0 0.0
  %465 = vmatpush1.msra.mxu0 %v459
  %466 = vmatprep.subr.mxu0 0.0
  %467 = vmatpush1.msra.mxu0 0.0
  %468 = vmatprep.subr.mxu0 0.0
  %469 = vmatpush1.msra.mxu0 0.0
  %470 = vmatprep.subr.mxu0 0.0
  %471 = vmatpush1.msra.mxu0 0.0
  %472 = vmatprep.subr.mxu0 0.0
  %473 = vmatpush1.msra.mxu0 0.0
  %474 = vmatprep.subr.mxu0 0.0
  %475 = vmatpush1.msra.mxu0 0.0
  %476 = vmatprep.subr.mxu0 0.0
  %477 = vmatpush1.msra.mxu0 0.0
  %478 = vmatprep.subr.mxu0 0.0
  %479 = vmatpush1.msra.mxu0 0.0
  %480 = vmatprep.subr.mxu0 0.0
  %481 = vmatpush1.msra.mxu0 0.0
  %482 = vmatprep.subr.mxu0 0.0
  %483 = vmatpush1.msra.mxu0 0.0
  %484 = vmatprep.subr.mxu0 0.0
  %485 = vmatpush1.msra.mxu0 0.0
  %486 = vmatprep.subr.mxu0 0.0
  %487 = vmatpush1.msra.mxu0 0.0
  %488 = vmatprep.subr.mxu0 0.0
  %489 = vmatpush1.msra.mxu0 0.0
  %490 = vmatprep.subr.mxu0 0.0
  %491 = vmatpush1.msra.mxu0 0.0
  %492 = vmatprep.subr.mxu0 0.0
  %493 = vmatpush1.msra.mxu0 0.0
  %494 = vmatprep.subr.mxu0 0.0
  %495 = vmatpush1.msra.mxu0 0.0
  %496 = vmatprep.subr.mxu0 0.0
  %497 = vmatpush1.msra.mxu0 0.0
  %498 = vmatprep.subr.mxu0 0.0
  %499 = vmatpush1.msra.mxu0 0.0
  %500 = vmatprep.subr.mxu0 0.0
  %501 = vmatpush1.msra.mxu0 0.0
  %502 = vmatprep.subr.mxu0 0.0
  %503 = vmatpush1.msra.mxu0 0.0
  %504 = vmatprep.subr.mxu0 0.0
  %505 = vmatpush1.msra.mxu0 0.0
  %506 = vmatprep.subr.mxu0 0.0
  %507 = vmatpush1.msra.mxu0 0.0
  %508 = vmatprep.subr.mxu0 0.0
  %509 = vmatpush1.msra.mxu0 0.0
  %510 = vmatprep.subr.mxu0 0.0
  %511 = vmatpush1.msra.mxu0 0.0
  %512 = vmatprep.subr.mxu0 0.0
  %513 = vmatpush1.msra.mxu0 0.0
  %514 = vmatprep.subr.mxu0 0.0
  %515 = vmatpush1.msra.mxu0 0.0
  %516 = vmatprep.subr.mxu0 0.0
  %517 = vmatpush1.msra.mxu0 0.0
  %518 = vmatprep.subr.mxu0 0.0
  %519 = vmatpush1.msra.mxu0 0.0
  %520 = vmatprep.subr.mxu0 0.0
  %521 = vmatpush1.msra.mxu0 0.0
  %522 = vmatprep.subr.mxu0 0.0
  %523 = vmatpush1.msra.mxu0 0.0
  %524 = vmatprep.mubr.f32.mxu0 0.0
  %525 = vmatmul.mubr.f32.gmra.mrb[0].mxu0 %v125
  %v526 = vpop.f32.mrb[0].mxu0
  %v527 = vadd.f32 %v111, %v526
  %v528 = vpop.f32.mrb[0].mxu0
  %529 = vmatprep.mubr.f32.mxu0 0.0
  %530 = vmatmul.mubr.f32.gmra.mrb[0].mxu0 %v128
  %v531 = vpop.f32.mrb[0].mxu0
  %v532 = vadd.f32 %v116, %v531
  %v533 = vpop.f32.mrb[0].mxu0
  %534 = vmatprep.mubr.f32.mxu0 0.0
  %535 = vmatmul.mubr.f32.gmra.mrb[0].mxu0 %v131
  %v536 = vpop.f32.mrb[0].mxu0
  %v537 = vadd.f32 %v121, %v536
  %v538 = vpop.f32.mrb[0].mxu0
  %539 = vdwg.mxu0
  %v540 = vtanh.pop %v527
  %v541 = vtanh.pop %v532
  %v542 = vtanh.pop %v537
  %v543 = vadd.f32 %v434, %v540
  %v544 = vadd.f32 %v435, %v541
  %v545 = vadd.f32 %v436, %v542
  %v546 = vlaneseq
  %v547 = vshrl.u32 %v546, 7
  %v548 = vsub.s32 4, %v547
  %v549 = vrot.slane %v29, %v548
  %v550 = vmul.f32 %v46, %v549
  %v551 = vmul.f32 %v51, %v549
  %v552 = vmul.f32 %v56, %v549
  %v553 = vlaneseq
  %v554 = vshrl.u32 %v553, 7
  %v555 = vsub.s32 4, %v554
  %v556 = vrot.slane %v30, %v555
  %v557 = vmul.f32 %v67, %v556
  %v558 = vmul.f32 %v71, %v556
  %v559 = vmul.f32 %v75, %v556
  %v560 = vadd.f32 %v550, %v557
  %v561 = vadd.f32 %v551, %v558
  %v562 = vadd.f32 %v552, %v559
  %v563 = vadd.f32 %v560, %v90
  %v564 = vadd.f32 %v561, %v95
  %v565 = vadd.f32 %v562, %v100
  %v566 = vtanh.pop %v563
  %v567 = vtanh.pop %v564
  %v568 = vtanh.pop %v565
  %569 = vmatprep.subr.mxu0 0.0
  %570 = vmatpush1.msra.mxu0 %v566
  %571 = vmatprep.subr.mxu0 0.0
  %572 = vmatpush1.msra.mxu0 %v567
  %573 = vmatprep.subr.mxu0 0.0
  %574 = vmatpush1.msra.mxu0 %v568
  %575 = vmatprep.subr.mxu0 0.0
  %576 = vmatpush1.msra.mxu0 0.0
  %577 = vmatprep.subr.mxu0 0.0
  %578 = vmatpush1.msra.mxu0 0.0
  %579 = vmatprep.subr.mxu0 0.0
  %580 = vmatpush1.msra.mxu0 0.0
  %581 = vmatprep.subr.mxu0 0.0
  %582 = vmatpush1.msra.mxu0 0.0
  %583 = vmatprep.subr.mxu0 0.0
  %584 = vmatpush1.msra.mxu0 0.0
  %585 = vmatprep.subr.mxu0 0.0
  %586 = vmatpush1.msra.mxu0 0.0
  %587 = vmatprep.subr.mxu0 0.0
  %588 = vmatpush1.msra.mxu0 0.0
  %589 = vmatprep.subr.mxu0 0.0
  %590 = vmatpush1.msra.mxu0 0.0
  %591 = vmatprep.subr.mxu0 0.0
  %592 = vmatpush1.msra.mxu0 0.0
  %593 = vmatprep.subr.mxu0 0.0
  %594 = vmatpush1.msra.mxu0 0.0
  %595 = vmatprep.subr.mxu0 0.0
  %596 = vmatpush1.msra.mxu0 0.0
  %597 = vmatprep.subr.mxu0 0.0
  %598 = vmatpush1.msra.mxu0 0.0
  %599 = vmatprep.subr.mxu0 0.0
  %600 = vmatpush1.msra.mxu0 0.0
  %601 = vmatprep.subr.mxu0 0.0
  %602 = vmatpush1.msra.mxu0 0.0
  %603 = vmatprep.subr.mxu0 0.0
  %604 = vmatpush1.msra.mxu0 0.0
  %605 = vmatprep.subr.mxu0 0.0
  %606 = vmatpush1.msra.mxu0 0.0
  %607 = vmatprep.subr.mxu0 0.0
  %608 = vmatpush1.msra.mxu0 0.0
  %609 = vmatprep.subr.mxu0 0.0
  %610 = vmatpush1.msra.mxu0 0.0
  %611 = vmatprep.subr.mxu0 0.0
  %612 = vmatpush1.msra.mxu0 0.0
  %613 = vmatprep.subr.mxu0 0.0
  %614 = vmatpush1.msra.mxu0 0.0
  %615 = vmatprep.subr.mxu0 0.0
  %616 = vmatpush1.msra.mxu0 0.0
  %617 = vmatprep.subr.mxu0 0.0
  %618 = vmatpush1.msra.mxu0 0.0
  %619 = vmatprep.subr.mxu0 0.0
  %620 = vmatpush1.msra.mxu0 0.0
  %621 = vmatprep.subr.mxu0 0.0
  %622 = vmatpush1.msra.mxu0 0.0
  %623 = vmatprep.subr.mxu0 0.0
  %624 = vmatpush1.msra.mxu0 0.0
  %625 = vmatprep.subr.mxu0 0.0
  %626 = vmatpush1.msra.mxu0 0.0
  %627 = vmatprep.subr.mxu0 0.0
  %628 = vmatpush1.msra.mxu0 0.0
  %629 = vmatprep.subr.mxu0 0.0
  %630 = vmatpush1.msra.mxu0 0.0
  %631 = vmatprep.subr.mxu0 0.0
  %632 = vmatpush1.msra.mxu0 0.0
  %633 = vmatprep.mubr.f32.mxu0 0.0
  %634 = vmatmul.mubr.f32.gmra.mrb[0].mxu0 %v125
  %v635 = vpop.f32.mrb[0].mxu0
  %v636 = vadd.f32 %v111, %v635
  %v637 = vpop.f32.mrb[0].mxu0
  %638 = vmatprep.mubr.f32.mxu0 0.0
  %639 = vmatmul.mubr.f32.gmra.mrb[0].mxu0 %v128
  %v640 = vpop.f32.mrb[0].mxu0
  %v641 = vadd.f32 %v116, %v640
  %v642 = vpop.f32.mrb[0].mxu0
  %643 = vmatprep.mubr.f32.mxu0 0.0
  %644 = vmatmul.mubr.f32.gmra.mrb[0].mxu0 %v131
  %v645 = vpop.f32.mrb[0].mxu0
  %v646 = vadd.f32 %v121, %v645
  %v647 = vpop.f32.mrb[0].mxu0
  %648 = vdwg.mxu0
  %v649 = vtanh.pop %v636
  %v650 = vtanh.pop %v641
  %v651 = vtanh.pop %v646
  %v652 = vadd.f32 %v543, %v649
  %v653 = vadd.f32 %v544, %v650
  %v654 = vadd.f32 %v545, %v651
  %v655 = vlaneseq
  %v656 = vshrl.u32 %v655, 7
  %v657 = vsub.s32 5, %v656
  %v658 = vrot.slane %v29, %v657
  %v659 = vmul.f32 %v46, %v658
  %v660 = vmul.f32 %v51, %v658
  %v661 = vmul.f32 %v56, %v658
  %v662 = vlaneseq
  %v663 = vshrl.u32 %v662, 7
  %v664 = vsub.s32 5, %v663
  %v665 = vrot.slane %v30, %v664
  %v666 = vmul.f32 %v67, %v665
  %v667 = vmul.f32 %v71, %v665
  %v668 = vmul.f32 %v75, %v665
  %v669 = vadd.f32 %v659, %v666
  %v670 = vadd.f32 %v660, %v667
  %v671 = vadd.f32 %v661, %v668
  %v672 = vadd.f32 %v669, %v90
  %v673 = vadd.f32 %v670, %v95
  %v674 = vadd.f32 %v671, %v100
  %v675 = vtanh.pop %v672
  %v676 = vtanh.pop %v673
  %v677 = vtanh.pop %v674
  %678 = vmatprep.subr.mxu0 0.0
  %679 = vmatpush1.msra.mxu0 %v675
  %680 = vmatprep.subr.mxu0 0.0
  %681 = vmatpush1.msra.mxu0 %v676
  %682 = vmatprep.subr.mxu0 0.0
  %683 = vmatpush1.msra.mxu0 %v677
  %684 = vmatprep.subr.mxu0 0.0
  %685 = vmatpush1.msra.mxu0 0.0
  %686 = vmatprep.subr.mxu0 0.0
  %687 = vmatpush1.msra.mxu0 0.0
  %688 = vmatprep.subr.mxu0 0.0
  %689 = vmatpush1.msra.mxu0 0.0
  %690 = vmatprep.subr.mxu0 0.0
  %691 = vmatpush1.msra.mxu0 0.0
  %692 = vmatprep.subr.mxu0 0.0
  %693 = vmatpush1.msra.mxu0 0.0
  %694 = vmatprep.subr.mxu0 0.0
  %695 = vmatpush1.msra.mxu0 0.0
  %696 = vmatprep.subr.mxu0 0.0
  %697 = vmatpush1.msra.mxu0 0.0
  %698 = vmatprep.subr.mxu0 0.0
  %699 = vmatpush1.msra.mxu0 0.0
  %700 = vmatprep.subr.mxu0 0.0
  %701 = vmatpush1.msra.mxu0 0.0
  %702 = vmatprep.subr.mxu0 0.0
  %703 = vmatpush1.msra.mxu0 0.0
  %704 = vmatprep.subr.mxu0 0.0
  %705 = vmatpush1.msra.mxu0 0.0
  %706 = vmatprep.subr.mxu0 0.0
  %707 = vmatpush1.msra.mxu0 0.0
  %708 = vmatprep.subr.mxu0 0.0
  %709 = vmatpush1.msra.mxu0 0.0
  %710 = vmatprep.subr.mxu0 0.0
  %711 = vmatpush1.msra.mxu0 0.0
  %712 = vmatprep.subr.mxu0 0.0
  %713 = vmatpush1.msra.mxu0 0.0
  %714 = vmatprep.subr.mxu0 0.0
  %715 = vmatpush1.msra.mxu0 0.0
  %716 = vmatprep.subr.mxu0 0.0
  %717 = vmatpush1.msra.mxu0 0.0
  %718 = vmatprep.subr.mxu0 0.0
  %719 = vmatpush1.msra.mxu0 0.0
  %720 = vmatprep.subr.mxu0 0.0
  %721 = vmatpush1.msra.mxu0 0.0
  %722 = vmatprep.subr.mxu0 0.0
  %723 = vmatpush1.msra.mxu0 0.0
  %724 = vmatprep.subr.mxu0 0.0
  %725 = vmatpush1.msra.mxu0 0.0
  %726 = vmatprep.subr.mxu0 0.0
  %727 = vmatpush1.msra.mxu0 0.0
  %728 = vmatprep.subr.mxu0 0.0
  %729 = vmatpush1.msra.mxu0 0.0
  %730 = vmatprep.subr.mxu0 0.0
  %731 = vmatpush1.msra.mxu0 0.0
  %732 = vmatprep.subr.mxu0 0.0
  %733 = vmatpush1.msra.mxu0 0.0
  %734 = vmatprep.subr.mxu0 0.0
  %735 = vmatpush1.msra.mxu0 0.0
  %736 = vmatprep.subr.mxu0 0.0
  %737 = vmatpush1.msra.mxu0 0.0
  %738 = vmatprep.subr.mxu0 0.0
  %739 = vmatpush1.msra.mxu0 0.0
  %740 = vmatprep.subr.mxu0 0.0
  %741 = vmatpush1.msra.mxu0 0.0
  %742 = vmatprep.mubr.f32.mxu0 0.0
  %743 = vmatmul.mubr.f32.gmra.mrb[0].mxu0 %v125
  %v744 = vpop.f32.mrb[0].mxu0
  %v745 = vadd.f32 %v111, %v744
  %v746 = vpop.f32.mrb[0].mxu0
  %747 = vmatprep.mubr.f32.mxu0 0.0
  %748 = vmatmul.mubr.f32.gmra.mrb[0].mxu0 %v128
  %v749 = vpop.f32.mrb[0].mxu0
  %v750 = vadd.f32 %v116, %v749
  %v751 = vpop.f32.mrb[0].mxu0
  %752 = vmatprep.mubr.f32.mxu0 0.0
  %753 = vmatmul.mubr.f32.gmra.mrb[0].mxu0 %v131
  %v754 = vpop.f32.mrb[0].mxu0
  %v755 = vadd.f32 %v121, %v754
  %v756 = vpop.f32.mrb[0].mxu0
  %757 = vdwg.mxu0
  %v758 = vtanh.pop %v745
  %v759 = vtanh.pop %v750
  %v760 = vtanh.pop %v755
  %v761 = vadd.f32 %v652, %v758
  %v762 = vadd.f32 %v653, %v759
  %v763 = vadd.f32 %v654, %v760
  %v764 = vlaneseq
  %v765 = vshrl.u32 %v764, 7
  %v766 = vsub.s32 6, %v765
  %v767 = vrot.slane %v29, %v766
  %v768 = vmul.f32 %v46, %v767
  %v769 = vmul.f32 %v51, %v767
  %v770 = vmul.f32 %v56, %v767
  %v771 = vlaneseq
  %v772 = vshrl.u32 %v771, 7
  %v773 = vsub.s32 6, %v772
  %v774 = vrot.slane %v30, %v773
  %v775 = vmul.f32 %v67, %v774
  %v776 = vmul.f32 %v71, %v774
  %v777 = vmul.f32 %v75, %v774
  %v778 = vadd.f32 %v768, %v775
  %v779 = vadd.f32 %v769, %v776
  %v780 = vadd.f32 %v770, %v777
  %v781 = vadd.f32 %v778, %v90
  %v782 = vadd.f32 %v779, %v95
  %v783 = vadd.f32 %v780, %v100
  %v784 = vtanh.pop %v781
  %v785 = vtanh.pop %v782
  %v786 = vtanh.pop %v783
  %787 = vmatprep.subr.mxu0 0.0
  %788 = vmatpush1.msra.mxu0 %v784
  %789 = vmatprep.subr.mxu0 0.0
  %790 = vmatpush1.msra.mxu0 %v785
  %791 = vmatprep.subr.mxu0 0.0
  %792 = vmatpush1.msra.mxu0 %v786
  %793 = vmatprep.subr.mxu0 0.0
  %794 = vmatpush1.msra.mxu0 0.0
  %795 = vmatprep.subr.mxu0 0.0
  %796 = vmatpush1.msra.mxu0 0.0
  %797 = vmatprep.subr.mxu0 0.0
  %798 = vmatpush1.msra.mxu0 0.0
  %799 = vmatprep.subr.mxu0 0.0
  %800 = vmatpush1.msra.mxu0 0.0
  %801 = vmatprep.subr.mxu0 0.0
  %802 = vmatpush1.msra.mxu0 0.0
  %803 = vmatprep.subr.mxu0 0.0
  %804 = vmatpush1.msra.mxu0 0.0
  %805 = vmatprep.subr.mxu0 0.0
  %806 = vmatpush1.msra.mxu0 0.0
  %807 = vmatprep.subr.mxu0 0.0
  %808 = vmatpush1.msra.mxu0 0.0
  %809 = vmatprep.subr.mxu0 0.0
  %810 = vmatpush1.msra.mxu0 0.0
  %811 = vmatprep.subr.mxu0 0.0
  %812 = vmatpush1.msra.mxu0 0.0
  %813 = vmatprep.subr.mxu0 0.0
  %814 = vmatpush1.msra.mxu0 0.0
  %815 = vmatprep.subr.mxu0 0.0
  %816 = vmatpush1.msra.mxu0 0.0
  %817 = vmatprep.subr.mxu0 0.0
  %818 = vmatpush1.msra.mxu0 0.0
  %819 = vmatprep.subr.mxu0 0.0
  %820 = vmatpush1.msra.mxu0 0.0
  %821 = vmatprep.subr.mxu0 0.0
  %822 = vmatpush1.msra.mxu0 0.0
  %823 = vmatprep.subr.mxu0 0.0
  %824 = vmatpush1.msra.mxu0 0.0
  %825 = vmatprep.subr.mxu0 0.0
  %826 = vmatpush1.msra.mxu0 0.0
  %827 = vmatprep.subr.mxu0 0.0
  %828 = vmatpush1.msra.mxu0 0.0
  %829 = vmatprep.subr.mxu0 0.0
  %830 = vmatpush1.msra.mxu0 0.0
  %831 = vmatprep.subr.mxu0 0.0
  %832 = vmatpush1.msra.mxu0 0.0
  %833 = vmatprep.subr.mxu0 0.0
  %834 = vmatpush1.msra.mxu0 0.0
  %835 = vmatprep.subr.mxu0 0.0
  %836 = vmatpush1.msra.mxu0 0.0
  %837 = vmatprep.subr.mxu0 0.0
  %838 = vmatpush1.msra.mxu0 0.0
  %839 = vmatprep.subr.mxu0 0.0
  %840 = vmatpush1.msra.mxu0 0.0
  %841 = vmatprep.subr.mxu0 0.0
  %842 = vmatpush1.msra.mxu0 0.0
  %843 = vmatprep.subr.mxu0 0.0
  %844 = vmatpush1.msra.mxu0 0.0
  %845 = vmatprep.subr.mxu0 0.0
  %846 = vmatpush1.msra.mxu0 0.0
  %847 = vmatprep.subr.mxu0 0.0
  %848 = vmatpush1.msra.mxu0 0.0
  %849 = vmatprep.subr.mxu0 0.0
  %850 = vmatpush1.msra.mxu0 0.0
  %851 = vmatprep.mubr.f32.mxu0 0.0
  %852 = vmatmul.mubr.f32.gmra.mrb[0].mxu0 %v125
  %v853 = vpop.f32.mrb[0].mxu0
  %v854 = vadd.f32 %v111, %v853
  %v855 = vpop.f32.mrb[0].mxu0
  %856 = vmatprep.mubr.f32.mxu0 0.0
  %857 = vmatmul.mubr.f32.gmra.mrb[0].mxu0 %v128
  %v858 = vpop.f32.mrb[0].mxu0
  %v859 = vadd.f32 %v116, %v858
  %v860 = vpop.f32.mrb[0].mxu0
  %861 = vmatprep.mubr.f32.mxu0 0.0
  %862 = vmatmul.mubr.f32.gmra.mrb[0].mxu0 %v131
  %v863 = vpop.f32.mrb[0].mxu0
  %v864 = vadd.f32 %v121, %v863
  %v865 = vpop.f32.mrb[0].mxu0
  %866 = vdwg.mxu0
  %v867 = vtanh.pop %v854
  %v868 = vtanh.pop %v859
  %v869 = vtanh.pop %v864
  %v870 = vadd.f32 %v761, %v867
  %v871 = vadd.f32 %v762, %v868
  %v872 = vadd.f32 %v763, %v869
  %v873 = vlaneseq
  %v874 = vshrl.u32 %v873, 7
  %v875 = vsub.s32 7, %v874
  %v876 = vrot.slane %v29, %v875
  %v877 = vmul.f32 %v46, %v876
  %v878 = vmul.f32 %v51, %v876
  %v879 = vmul.f32 %v56, %v876
  %v880 = vlaneseq
  %v881 = vshrl.u32 %v880, 7
  %v882 = vsub.s32 7, %v881
  %v883 = vrot.slane %v30, %v882
  %v884 = vmul.f32 %v67, %v883
  %v885 = vmul.f32 %v71, %v883
  %v886 = vmul.f32 %v75, %v883
  %v887 = vadd.f32 %v877, %v884
  %v888 = vadd.f32 %v878, %v885
  %v889 = vadd.f32 %v879, %v886
  %v890 = vadd.f32 %v887, %v90
  %v891 = vadd.f32 %v888, %v95
  %v892 = vadd.f32 %v889, %v100
  %v893 = vtanh.pop %v890
  %v894 = vtanh.pop %v891
  %v895 = vtanh.pop %v892
  %896 = vmatprep.subr.mxu0 0.0
  %897 = vmatpush1.msra.mxu0 %v893
  %898 = vmatprep.subr.mxu0 0.0
  %899 = vmatpush1.msra.mxu0 %v894
  %900 = vmatprep.subr.mxu0 0.0
  %901 = vmatpush1.msra.mxu0 %v895
  %902 = vmatprep.subr.mxu0 0.0
  %903 = vmatpush1.msra.mxu0 0.0
  %904 = vmatprep.subr.mxu0 0.0
  %905 = vmatpush1.msra.mxu0 0.0
  %906 = vmatprep.subr.mxu0 0.0
  %907 = vmatpush1.msra.mxu0 0.0
  %908 = vmatprep.subr.mxu0 0.0
  %909 = vmatpush1.msra.mxu0 0.0
  %910 = vmatprep.subr.mxu0 0.0
  %911 = vmatpush1.msra.mxu0 0.0
  %912 = vmatprep.subr.mxu0 0.0
  %913 = vmatpush1.msra.mxu0 0.0
  %914 = vmatprep.subr.mxu0 0.0
  %915 = vmatpush1.msra.mxu0 0.0
  %916 = vmatprep.subr.mxu0 0.0
  %917 = vmatpush1.msra.mxu0 0.0
  %918 = vmatprep.subr.mxu0 0.0
  %919 = vmatpush1.msra.mxu0 0.0
  %920 = vmatprep.subr.mxu0 0.0
  %921 = vmatpush1.msra.mxu0 0.0
  %922 = vmatprep.subr.mxu0 0.0
  %923 = vmatpush1.msra.mxu0 0.0
  %924 = vmatprep.subr.mxu0 0.0
  %925 = vmatpush1.msra.mxu0 0.0
  %926 = vmatprep.subr.mxu0 0.0
  %927 = vmatpush1.msra.mxu0 0.0
  %928 = vmatprep.subr.mxu0 0.0
  %929 = vmatpush1.msra.mxu0 0.0
  %930 = vmatprep.subr.mxu0 0.0
  %931 = vmatpush1.msra.mxu0 0.0
  %932 = vmatprep.subr.mxu0 0.0
  %933 = vmatpush1.msra.mxu0 0.0
  %934 = vmatprep.subr.mxu0 0.0
  %935 = vmatpush1.msra.mxu0 0.0
  %936 = vmatprep.subr.mxu0 0.0
  %937 = vmatpush1.msra.mxu0 0.0
  %938 = vmatprep.subr.mxu0 0.0
  %939 = vmatpush1.msra.mxu0 0.0
  %940 = vmatprep.subr.mxu0 0.0
  %941 = vmatpush1.msra.mxu0 0.0
  %942 = vmatprep.subr.mxu0 0.0
  %943 = vmatpush1.msra.mxu0 0.0
  %944 = vmatprep.subr.mxu0 0.0
  %945 = vmatpush1.msra.mxu0 0.0
  %946 = vmatprep.subr.mxu0 0.0
  %947 = vmatpush1.msra.mxu0 0.0
  %948 = vmatprep.subr.mxu0 0.0
  %949 = vmatpush1.msra.mxu0 0.0
  %950 = vmatprep.subr.mxu0 0.0
  %951 = vmatpush1.msra.mxu0 0.0
  %952 = vmatprep.subr.mxu0 0.0
  %953 = vmatpush1.msra.mxu0 0.0
  %954 = vmatprep.subr.mxu0 0.0
  %955 = vmatpush1.msra.mxu0 0.0
  %956 = vmatprep.subr.mxu0 0.0
  %957 = vmatpush1.msra.mxu0 0.0
  %958 = vmatprep.subr.mxu0 0.0
  %959 = vmatpush1.msra.mxu0 0.0
  %960 = vmatprep.mubr.f32.mxu0 0.0
  %961 = vmatmul.mubr.f32.gmra.mrb[0].mxu0 %v125
  %v962 = vpop.f32.mrb[0].mxu0
  %v963 = vadd.f32 %v111, %v962
  %v964 = vpop.f32.mrb[0].mxu0
  %965 = vmatprep.mubr.f32.mxu0 0.0
  %966 = vmatmul.mubr.f32.gmra.mrb[0].mxu0 %v128
  %v967 = vpop.f32.mrb[0].mxu0
  %v968 = vadd.f32 %v116, %v967
  %v969 = vpop.f32.mrb[0].mxu0
  %970 = vmatprep.mubr.f32.mxu0 0.0
  %971 = vmatmul.mubr.f32.gmra.mrb[0].mxu0 %v131
  %v972 = vpop.f32.mrb[0].mxu0
  %v973 = vadd.f32 %v121, %v972
  %v974 = vpop.f32.mrb[0].mxu0
  %975 = vdwg.mxu0
  %v976 = vtanh.pop %v963
  %v977 = vtanh.pop %v968
  %v978 = vtanh.pop %v973
  %v979 = vadd.f32 %v870, %v976
  %v980 = vadd.f32 %v871, %v977
  %v981 = vadd.f32 %v872, %v978
  %v982 = vld [vmem:[%s5] sm:$0x3]
  %v983 = vld [vmem:[%s6] sm:$0x3]
  %v984 = vmul.f32 %v983, 8.0
  %986 = vset.pattern.permute.xlu0 0
  %987 = vperm.xlu0 %986, %v984
  %v988 = vpop.permute.xlu0 %987
  %v991 = vsel %vm123, %v982, 0
  %993 = vmatprep.subr.mxu0 0.0
  %994 = vmatpush1.msra.mxu0 %v979
  %995 = vmatprep.subr.mxu0 0.0
  %996 = vmatpush1.msra.mxu0 %v980
  %997 = vmatprep.subr.mxu0 0.0
  %998 = vmatpush1.msra.mxu0 %v981
  %999 = vmatprep.subr.mxu0 0.0
  %1000 = vmatpush1.msra.mxu0 0.0
  %1001 = vmatprep.subr.mxu0 0.0
  %1002 = vmatpush1.msra.mxu0 0.0
  %1003 = vmatprep.subr.mxu0 0.0
  %1004 = vmatpush1.msra.mxu0 0.0
  %1005 = vmatprep.subr.mxu0 0.0
  %1006 = vmatpush1.msra.mxu0 0.0
  %1007 = vmatprep.subr.mxu0 0.0
  %1008 = vmatpush1.msra.mxu0 0.0
  %1009 = vmatprep.subr.mxu0 0.0
  %1010 = vmatpush1.msra.mxu0 0.0
  %1011 = vmatprep.subr.mxu0 0.0
  %1012 = vmatpush1.msra.mxu0 0.0
  %1013 = vmatprep.subr.mxu0 0.0
  %1014 = vmatpush1.msra.mxu0 0.0
  %1015 = vmatprep.subr.mxu0 0.0
  %1016 = vmatpush1.msra.mxu0 0.0
  %1017 = vmatprep.subr.mxu0 0.0
  %1018 = vmatpush1.msra.mxu0 0.0
  %1019 = vmatprep.subr.mxu0 0.0
  %1020 = vmatpush1.msra.mxu0 0.0
  %1021 = vmatprep.subr.mxu0 0.0
  %1022 = vmatpush1.msra.mxu0 0.0
  %1023 = vmatprep.subr.mxu0 0.0
  %1024 = vmatpush1.msra.mxu0 0.0
  %1025 = vmatprep.subr.mxu0 0.0
  %1026 = vmatpush1.msra.mxu0 0.0
  %1027 = vmatprep.subr.mxu0 0.0
  %1028 = vmatpush1.msra.mxu0 0.0
  %1029 = vmatprep.subr.mxu0 0.0
  %1030 = vmatpush1.msra.mxu0 0.0
  %1031 = vmatprep.subr.mxu0 0.0
  %1032 = vmatpush1.msra.mxu0 0.0
  %1033 = vmatprep.subr.mxu0 0.0
  %1034 = vmatpush1.msra.mxu0 0.0
  %1035 = vmatprep.subr.mxu0 0.0
  %1036 = vmatpush1.msra.mxu0 0.0
  %1037 = vmatprep.subr.mxu0 0.0
  %1038 = vmatpush1.msra.mxu0 0.0
  %1039 = vmatprep.subr.mxu0 0.0
  %1040 = vmatpush1.msra.mxu0 0.0
  %1041 = vmatprep.subr.mxu0 0.0
  %1042 = vmatpush1.msra.mxu0 0.0
  %1043 = vmatprep.subr.mxu0 0.0
  %1044 = vmatpush1.msra.mxu0 0.0
  %1045 = vmatprep.subr.mxu0 0.0
  %1046 = vmatpush1.msra.mxu0 0.0
  %1047 = vmatprep.subr.mxu0 0.0
  %1048 = vmatpush1.msra.mxu0 0.0
  %1049 = vmatprep.subr.mxu0 0.0
  %1050 = vmatpush1.msra.mxu0 0.0
  %1051 = vmatprep.subr.mxu0 0.0
  %1052 = vmatpush1.msra.mxu0 0.0
  %1053 = vmatprep.subr.mxu0 0.0
  %1054 = vmatpush1.msra.mxu0 0.0
  %1055 = vmatprep.subr.mxu0 0.0
  %1056 = vmatpush1.msra.mxu0 0.0
  %1057 = vmatprep.mubr.f32.mxu0 0.0
  %1058 = vmatmul.mubr.f32.gmra.mrb[0].mxu0 %v991
  %v1059 = vpop.f32.mrb[0].mxu0
  %v1060 = vadd.f32 %v988, %v1059
  %v1061 = vpop.f32.mrb[0].mxu0
  %1062 = vdwg.mxu0
  %vm1063 = vcmask 25600
  %1064 = vst.msk [vmem:[%s7] sm:$0x3] %vm1063, %v1060
  // Predicated region
  $region30: #{nn_set_embedding.1} parent=0 // pred_check
    _
  $region31: #{nn_set_embedding.1} parent=0 // pred_check_branch
    %1066 = sbr.rel (0) target = $region33
  $region32: #{nn_set_embedding.1} parent=0 // pred_region
    _
  $region33: #{nn_set_embedding.1} parent=0 // pred_fallthru
    _
  // Predicated region
  $region34: #{nn_set_embedding.1} parent=0 // pred_check
    _
  $region35: #{nn_set_embedding.1} parent=0 // pred_check_branch
    %1068 = sbr.rel (0) target = $region37
  $region36: #{nn_set_embedding.1} parent=0 // pred_region
    _
  $region37: #{nn_set_embedding.1} parent=0 // pred_fallthru
    _

</llo_original>
